<compile_context>
chip_gen: v6e
topology: v6e:2x2x1
jax: 0.10.0
libtpu: 0.0.40
codegen_flags: <defaults>
</compile_context>

<pallas_src>
import functools

import jax
import jax.numpy as jnp
from jax.experimental import pallas as pl
from jax.experimental.pallas import tpu as pltpu


# ----------------------------- kernels ------------------------------------- #

def _rmsnorm_kernel(x_ref, w_ref, o_ref, *, eps):
    # x_ref: (tile, D) with D the true hidden dim (lane-dense when D >= 128).
    x = x_ref[...].astype(jnp.float32)                       # x.float()
    ms = jnp.mean(x * x, axis=-1, keepdims=True)             # mean(x^2, -1, keepdim)
    inv = jax.lax.rsqrt(ms + eps)                            # rsqrt(... + eps)  (EUP)
    normed = (x * inv).astype(x_ref.dtype)                   # .type_as(x)
    o_ref[...] = (normed * w_ref[...]).astype(o_ref.dtype)   # * weight (promotes)


def _rmsnorm_packed_kernel(x_ref, w_ref, m_ref, o_ref, *, eps):
    # x_ref: (tile, pack*D); each group of D consecutive lanes is one logical row.
    # m_ref: (pack*D, pack*D) block-diagonal matrix with 1/D inside each segment,
    #        so (x*x) @ m broadcasts the per-segment mean to every lane of that
    #        segment -- keeps everything lane-dense and uses the MXU.
    x = x_ref[...].astype(jnp.float32)
    ms = jnp.dot(x * x, m_ref[...], preferred_element_type=jnp.float32)
    inv = jax.lax.rsqrt(ms + eps)
    normed = (x * inv).astype(x_ref.dtype)
    o_ref[...] = (normed * w_ref[...]).astype(o_ref.dtype)


# ----------------------------- helpers -------------------------------------- #

def _round_up(x, m):
    return ((x + m - 1) // m) * m


def _vmem_capacity_bytes():
    try:
        return int(pltpu.get_tpu_info().vmem_capacity_bytes)
    except Exception:
        return 64 * 1024 * 1024            # conservative (v7x-sized) fallback


def _choose_row_tile(n_rows, dk, in_itemsize, out_itemsize, vmem_capacity):
    """Row tile from a bytes-per-buffer target under a generation-aware budget."""
    # Sublane granularity: 8 rows for 32-bit, 16 for 16-bit, 32 for 8-bit dtypes.
    align = {4: 8, 2: 16, 1: 32}.get(min(in_itemsize, out_itemsize), 8)

    # VMEM per tile row: double-buffered in + out pipeline copies plus ~4 live
    # f32 temporaries in the body (x_f32, x*x, mean/matmul result, product).
    per_row = 2 * in_itemsize * dk + 2 * out_itemsize * dk + 4 * 4 * dk

    # ~4 MiB of input per tile on 64 MiB-VMEM parts (v7x), ~8 MiB on 128 MiB
    # parts (v5e/v6e): amortizes the ~0.35 us per-grid-step pipeline overhead.
    target_in_bytes = (8 if vmem_capacity >= 96 * 1024 * 1024 else 4) * 1024 * 1024
    tile = max(align, target_in_bytes // (dk * in_itemsize))

    # Keep total pipeline VMEM under ~5/8 of physical capacity.
    budget = (5 * vmem_capacity) // 8
    tile = min(tile, max(align, budget // per_row))

    # Keep >= 8 grid steps on large inputs so the "parallel" axis actually
    # distributes row tiles across both v7x TensorCores.
    if n_rows >= 8 * align:
        tile = min(tile, pl.cdiv(n_rows, 8))

    tile = max(align, (tile // align) * align)
    tile = min(tile, _round_up(n_rows, align))
    return tile


def _rmsnorm_tail(x2d, weight, eps, out_dtype):
    # Plain-JAX path for the < pack leftover rows (avoids a full-array pad/copy).
    xf = x2d.astype(jnp.float32)
    inv = jax.lax.rsqrt(jnp.mean(xf * xf, axis=-1, keepdims=True) + eps)
    normed = (xf * inv).astype(x2d.dtype)
    return (normed * weight).astype(out_dtype)


def _call_kernel(xk, consts, dk, n_rows, out_dtype, *, eps, packed,
                 logical_rows, logical_d):
    in_itemsize = jnp.dtype(xk.dtype).itemsize
    out_itemsize = jnp.dtype(out_dtype).itemsize
    vmem_cap = _vmem_capacity_bytes()

    tile = _choose_row_tile(n_rows, dk, in_itemsize, out_itemsize, vmem_cap)
    grid = (pl.cdiv(n_rows, tile),)        # ragged last block; OOB writes dropped

    if packed:
        kernel = functools.partial(_rmsnorm_packed_kernel, eps=eps)
        in_specs = [
            pl.BlockSpec((tile, dk), lambda i: (i, 0)),   # x tile
            pl.BlockSpec((1, dk), lambda i: (0, 0)),      # tiled weight (resident)
            pl.BlockSpec((dk, dk), lambda i: (0, 0)),     # block-diag mean matrix
        ]
        flops = 4 * logical_rows * logical_d + 2 * n_rows * dk * dk
        transcendentals = n_rows * dk                     # rsqrt runs on every lane
    else:
        kernel = functools.partial(_rmsnorm_kernel, eps=eps)
        in_specs = [
            pl.BlockSpec((tile, dk), lambda i: (i, 0)),   # x tile
            pl.BlockSpec((1, dk), lambda i: (0, 0)),      # weight (resident)
        ]
        flops = 4 * logical_rows * logical_d
        transcendentals = logical_rows

    cost = pl.CostEstimate(
        flops=int(flops),
        transcendentals=int(transcendentals),
        bytes_accessed=int(logical_rows * logical_d * (in_itemsize + out_itemsize)),
    )
    cparams = pltpu.CompilerParams(
        dimension_semantics=("parallel",),                # row tiles shard across TCs
        vmem_limit_bytes=int((3 * vmem_cap) // 4),        # generation-aware limit
    )

    return pl.pallas_call(
        kernel,
        out_shape=jax.ShapeDtypeStruct((n_rows, dk), out_dtype),
        grid_spec=pltpu.PrefetchScalarGridSpec(
            num_scalar_prefetch=0,
            grid=grid,
            in_specs=in_specs,
            out_specs=pl.BlockSpec((tile, dk), lambda i: (i, 0)),
        ),
        compiler_params=cparams,
        cost_estimate=cost,
    )(xk, *consts)


# ----------------------------- wrapper -------------------------------------- #

def rmsnorm(x, weight, *, eps=1e-6):
    """RMSNorm over the last axis.  x: [..., D], weight: [D]."""
    # TODO(synk): only axis=-1 (the module default) is implemented.
    orig_shape = x.shape
    d = orig_shape[-1]
    rows = 1
    for s in orig_shape[:-1]:
        rows *= s

    out_dtype = jnp.result_type(x.dtype, weight.dtype)   # torch promotion of normed*weight
    if rows == 0:
        return x.astype(out_dtype)

    x2d = x.reshape(rows, d)

    # Lane-dense packing for small D.
    pack = 128 // d if (d < 128 and 128 % d == 0) else 1
    # TODO(synk): D < 128 with 128 % D != 0 still uses the narrow-lane path.

    if pack > 1:
        rem = rows % pack
        rows_main = rows - rem
        main = None
        if rows_main:
            xm = x2d if rem == 0 else x2d[:rows_main]
            prows = rows_main // pack
            dk = pack * d
            xk = xm.reshape(prows, dk)                    # free reshape (contiguous)
            w_in = jnp.tile(weight.reshape(1, d), (1, pack))
            seg = jnp.arange(dk, dtype=jnp.int32) // d
            seg_mean = jnp.where(seg[:, None] == seg[None, :],
                                 jnp.float32(1.0 / d), jnp.float32(0.0))
            main = _call_kernel(xk, (w_in, seg_mean), dk, prows, out_dtype,
                                eps=eps, packed=True,
                                logical_rows=rows_main, logical_d=d)
            main = main.reshape(rows_main, d)             # free reshape
        if rem:
            tail = _rmsnorm_tail(x2d[rows_main:], weight, eps, out_dtype)
            out2d = tail if main is None else jnp.concatenate([main, tail], axis=0)
        else:
            out2d = main
    else:
        w_in = weight.reshape(1, d)
        out2d = _call_kernel(x2d, (w_in,), d, rows, out_dtype,
                             eps=eps, packed=False,
                             logical_rows=rows, logical_d=d)

    return out2d.reshape(orig_shape)


# ----------------------------- reference ------------------------------------ #

def rmsnorm_ref(x, weight, eps=1e-6):
    xf = x.astype(jnp.float32)
    normed = (xf * jax.lax.rsqrt(jnp.mean(xf * xf, axis=-1, keepdims=True) + eps)
              ).astype(x.dtype)
    return normed * weight


if __name__ == "__main__":
    key = jax.random.PRNGKey(0)

    # Shapes implied by min_gru usage: [batch, seq, hidden].
    B, S, D = 2, 8, 32
    x = jax.random.normal(key, (B, S, D), dtype=jnp.float32)
    weight = jnp.ones((D,), dtype=jnp.float32)      # nn.Parameter(torch.ones(dim))

    out = jax.block_until_ready(rmsnorm(x, weight, eps=1e-6))
    ref = rmsnorm_ref(x, weight, eps=1e-6)
    assert out.shape == x.shape and out.dtype == x.dtype
    assert jnp.allclose(out, ref, atol=1e-5, rtol=1e-5), "mismatch (packed path)"

    # Lane-dense D >= 128 (unpacked path) with a non-trivial weight.
    x2 = jax.random.normal(jax.random.PRNGKey(1), (2, 12, 256), dtype=jnp.float32)
    w2 = jax.random.normal(jax.random.PRNGKey(2), (256,), dtype=jnp.float32)
    out2 = jax.block_until_ready(rmsnorm(x2, w2, eps=1e-6))
    assert jnp.allclose(out2, rmsnorm_ref(x2, w2, eps=1e-6), atol=1e-5, rtol=1e-5), \
        "mismatch (dense path)"

    # Packed path with rows % pack != 0 (exercises the plain-JAX tail, no padding).
    x3 = jax.random.normal(jax.random.PRNGKey(3), (1, 9, 32), dtype=jnp.float32)
    w3 = jax.random.normal(jax.random.PRNGKey(4), (32,), dtype=jnp.float32)
    out3 = jax.block_until_ready(rmsnorm(x3, w3, eps=1e-6))
    assert jnp.allclose(out3, rmsnorm_ref(x3, w3, eps=1e-6), atol=1e-5, rtol=1e-5), \
        "mismatch (packed path with remainder)"

    print("KERNEL_OK")
</pallas_src>

<mosaic_0001>
module attributes {stable_mosaic.version = 11 : i64} {
  func.func @_rmsnorm_packed_kernel(%arg0: i32, %arg1: memref<8x128xf32, #tpu.memory_space<vmem>>, %arg2: memref<1x128xf32, #tpu.memory_space<vmem>>, %arg3: memref<128x128xf32, #tpu.memory_space<vmem>>, %arg4: memref<8x128xf32, #tpu.memory_space<vmem>>) attributes {dimension_semantics = [#tpu.dimension_semantics<parallel>], iteration_bounds = array<i64: 1>, scalar_prefetch = 0 : i64, scratch_operands = 0 : i64, tpu.core_type = #tpu.core_type<tc>, window_params = [{transform_indices = @transform_0, window_bounds = array<i64: 8, 128>}, {pipeline_mode = #tpu.pipeline_mode<synchronous>, transform_indices = @transform_1, window_bounds = array<i64: 1, 128>}, {pipeline_mode = #tpu.pipeline_mode<synchronous>, transform_indices = @transform_2, window_bounds = array<i64: 128, 128>}, {transform_indices = @transform_3, window_bounds = array<i64: 8, 128>}]} {
    %c0 = arith.constant 0 : index
    %c0_0 = arith.constant 0 : index
    %0 = vector.load %arg1[%c0, %c0_0] : memref<8x128xf32, #tpu.memory_space<vmem>>, vector<8x128xf32>
    %1 = arith.mulf %0, %0 : vector<8x128xf32>
    %c0_1 = arith.constant 0 : index
    %c0_2 = arith.constant 0 : index
    %2 = vector.load %arg3[%c0_1, %c0_2] : memref<128x128xf32, #tpu.memory_space<vmem>>, vector<128x128xf32>
    %cst = arith.constant dense<0.000000e+00> : vector<8x128xf32>
    %3 = tpu.matmul %1, %2, %cst {dimension_numbers = #tpu.dot_dimension_numbers<[1], [0], [0], [1], [0, 0, 1, 1], [], []>} : vector<8x128xf32>, vector<128x128xf32>, vector<8x128xf32> -> vector<8x128xf32>
    %cst_3 = arith.constant 9.99999997E-7 : f32
    %4 = vector.broadcast %cst_3 : f32 to vector<8x128xf32>
    %5 = arith.addf %3, %4 : vector<8x128xf32>
    %6 = math.rsqrt %5 : vector<8x128xf32>
    %7 = arith.mulf %0, %6 : vector<8x128xf32>
    %c0_4 = arith.constant 0 : index
    %c0_5 = arith.constant 0 : index
    %8 = vector.load %arg2[%c0_4, %c0_5] : memref<1x128xf32, #tpu.memory_space<vmem>>, vector<1x128xf32>
    %9 = vector.broadcast %8 : vector<1x128xf32> to vector<8x128xf32>
    %10 = arith.mulf %7, %9 : vector<8x128xf32>
    %c0_6 = arith.constant 0 : index
    %c0_7 = arith.constant 0 : index
    %11 = vector.load %arg4[%c0_6, %c0_7] : memref<8x128xf32, #tpu.memory_space<vmem>>, vector<8x128xf32>
    tpu.vector_store %arg4[%c0_6, %c0_7], %10 {strides = array<i32>} : memref<8x128xf32, #tpu.memory_space<vmem>>, vector<8x128xf32>,
    return
  }
  func.func @transform_0(%arg0: i32) -> (i32, i32) {
    %c0_i32 = arith.constant 0 : i32
    %c0_i32_0 = arith.constant 0 : i32
    return %arg0, %c0_i32 : i32, i32
  }
  func.func @transform_1(%arg0: i32) -> (i32, i32) {
    %c0_i32 = arith.constant 0 : i32
    %c0_i32_0 = arith.constant 0 : i32
    %c0_i32_1 = arith.constant 0 : i32
    return %c0_i32, %c0_i32_0 : i32, i32
  }
  func.func @transform_2(%arg0: i32) -> (i32, i32) {
    %c0_i32 = arith.constant 0 : i32
    %c0_i32_0 = arith.constant 0 : i32
    %c0_i32_1 = arith.constant 0 : i32
    return %c0_i32, %c0_i32_0 : i32, i32
  }
  func.func @transform_3(%arg0: i32) -> (i32, i32) {
    %c0_i32 = arith.constant 0 : i32
    %c0_i32_0 = arith.constant 0 : i32
    return %arg0, %c0_i32 : i32, i32
  }
}

</mosaic_0001>

<llo_original>
// kernel: tpu_custom_call.1
$region0: #{tpu_custom_call.1}
  #allocation0 [shape = 'u32[]', space=smem, size = 0x4, offset = 0x4, fixed_abs, tag = 'smem constant byte address 0x4 - core index']
  #allocation1 [shape = 'u32[144,128]{1,0:T(1,128)}', space=vmem, size = 0x12000, scoped, tag = 'internal scratch']
  %s0 = inlined_call_operand.hbm [shape: f32[4,128], index: 0, kind: input, shape index: {}]
  %s1 = inlined_call_operand.vmem [shape: f32[1,128], index: 1, kind: input, shape index: {}]
  %s2 = inlined_call_operand.hbm [shape: f32[128,128], index: 2, kind: input, shape index: {}]
  %s3 = inlined_call_operand.hbm [shape: f32[4,128], index: 3, kind: output, shape index: {}]
  %s4 = sld [smem:[#allocation0]]
  $region30: #{tpu_custom_call.1} parent=0
    _
  %s6 = ssub.s32 1, %s4
  %s7 = scalar_select 0, %s6, %s4
  $region1: #{tpu_custom_call.1} parent=0
    #allocation2 [shape = 'u8[4096]{0}', space=vmem, size = 0x1000, scoped, tag = 'input window, operand 0, single buffered']
    #allocation3 [shape = 's32[1]{0}', space=sflag, size = 0x4, scoped, tag = 'scoped memory for tpu_custom_call.1']
    #allocation4 [shape = 's32[1]{0}', space=sflag, size = 0x4, scoped, tag = 'scoped memory for tpu_custom_call.1']
    #allocation5 [shape = 'u8[65536]{0}', space=vmem, size = 0x10000, scoped, tag = 'input window, operand 2, single buffered']
    #allocation6 [shape = 's32[1]{0}', space=sflag, size = 0x4, scoped, tag = 'scoped memory for tpu_custom_call.1']
    #allocation7 [shape = 'u8[4096]{0}', space=vmem, size = 0x1000, scoped, tag = 'output window, operand 0, single buffered']
    %8 = vsyncpa [#allocation3], 0
    %9 = vsyncpa [#allocation6], 0
    %10 = vsyncpa [#allocation4], 0
    // Predicated region
    $region2: #{tpu_custom_call.1} parent=1 // pred_check
      _
    $region3: #{tpu_custom_call.1} parent=1 // pred_check_branch
      %12 = sbr.rel (0) target = $region5
    $region4: #{tpu_custom_call.1} parent=1 // pred_region
      %s14 = ssub.s32 128, 64
      %15 = vsyncadd [#allocation3], %s14
      %s16 = sshll.u32 [#allocation2], 4
      %s17 = int_to_ptr.vmem [resolvable:$true] %s16
      %22 = dma.hbm_to_vmem [thread:$0]  %s0, 64, %s17, [#allocation3], 64, 64, 4
    $region5: #{tpu_custom_call.1} parent=1 // pred_fallthru
      _
    // Predicated region
    $region6: #{tpu_custom_call.1} parent=1 // pred_check
      _
    $region7: #{tpu_custom_call.1} parent=1 // pred_check_branch
      %24 = sbr.rel (0) target = $region9
    $region8: #{tpu_custom_call.1} parent=1 // pred_region
      _
    $region9: #{tpu_custom_call.1} parent=1 // pred_fallthru
      _
    // Predicated region
    $region10: #{tpu_custom_call.1} parent=1 // pred_check
      _
    $region11: #{tpu_custom_call.1} parent=1 // pred_check_branch
      %26 = sbr.rel (0) target = $region13
    $region12: #{tpu_custom_call.1} parent=1 // pred_region
      %s28 = ssub.s32 2048, 2048
      %29 = vsyncadd [#allocation6], %s28
      %s30 = sshll.u32 [#allocation5], 4
      %s31 = int_to_ptr.vmem [resolvable:$true] %s30
      %36 = dma.hbm_to_vmem [thread:$0]  %s2, 2048, %s31, [#allocation6], 128, 128, 8
    $region13: #{tpu_custom_call.1} parent=1 // pred_fallthru
      _
    // Predicated region
    $region14: #{tpu_custom_call.1} parent=1 // pred_check
      _
    $region15: #{tpu_custom_call.1} parent=1 // pred_check_branch
      %38 = sbr.rel (0) target = $region17
    $region16: #{tpu_custom_call.1} parent=1 // pred_region
      %39 = dma.done [#allocation3], 128
    $region17: #{tpu_custom_call.1} parent=1 // pred_fallthru
      _
    // Predicated region
    $region18: #{tpu_custom_call.1} parent=1 // pred_check
      _
    $region19: #{tpu_custom_call.1} parent=1 // pred_check_branch
      %41 = sbr.rel (0) target = $region21
    $region20: #{tpu_custom_call.1} parent=1 // pred_region
      %42 = dma.done [#allocation6], 2048
    $region21: #{tpu_custom_call.1} parent=1 // pred_fallthru
      _
    %v43 = vld [vmem:[#allocation2] sm:$0xff]
    %v44 = vmul.f32 %v43, %v43
    %v45 = vld [vmem:[#allocation5] sm:$0xff]
    %v46 = vld [vmem:[#allocation5 + $0x8] sm:$0xff]
    %v47 = vld [vmem:[#allocation5 + $0x10] sm:$0xff]
    %v48 = vld [vmem:[#allocation5 + $0x18] sm:$0xff]
    %v49 = vld [vmem:[#allocation5 + $0x20] sm:$0xff]
    %v50 = vld [vmem:[#allocation5 + $0x28] sm:$0xff]
    %v51 = vld [vmem:[#allocation5 + $0x30] sm:$0xff]
    %v52 = vld [vmem:[#allocation5 + $0x38] sm:$0xff]
    %v53 = vld [vmem:[#allocation5 + $0x40] sm:$0xff]
    %v54 = vld [vmem:[#allocation5 + $0x48] sm:$0xff]
    %v55 = vld [vmem:[#allocation5 + $0x50] sm:$0xff]
    %v56 = vld [vmem:[#allocation5 + $0x58] sm:$0xff]
    %v57 = vld [vmem:[#allocation5 + $0x60] sm:$0xff]
    %v58 = vld [vmem:[#allocation5 + $0x68] sm:$0xff]
    %v59 = vld [vmem:[#allocation5 + $0x70] sm:$0xff]
    %v60 = vld [vmem:[#allocation5 + $0x78] sm:$0xff]
    %61 = vmatprep.subr.mxu0 0.0
    %62 = vmatpush1.msra.mxu0 %v60
    %63 = vmatprep.subr.mxu0 0.0
    %64 = vmatpush1.msra.mxu0 %v59
    %65 = vmatprep.subr.mxu0 0.0
    %66 = vmatpush1.msra.mxu0 %v58
    %67 = vmatprep.subr.mxu0 0.0
    %68 = vmatpush1.msra.mxu0 %v57
    %69 = vmatprep.subr.mxu0 0.0
    %70 = vmatpush1.msra.mxu0 %v56
    %71 = vmatprep.subr.mxu0 0.0
    %72 = vmatpush1.msra.mxu0 %v55
    %73 = vmatprep.subr.mxu0 0.0
    %74 = vmatpush1.msra.mxu0 %v54
    %75 = vmatprep.subr.mxu0 0.0
    %76 = vmatpush1.msra.mxu0 %v53
    %77 = vmatprep.subr.mxu0 0.0
    %78 = vmatpush1.msra.mxu0 %v52
    %79 = vmatprep.subr.mxu0 0.0
    %80 = vmatpush1.msra.mxu0 %v51
    %81 = vmatprep.subr.mxu0 0.0
    %82 = vmatpush1.msra.mxu0 %v50
    %83 = vmatprep.subr.mxu0 0.0
    %84 = vmatpush1.msra.mxu0 %v49
    %85 = vmatprep.subr.mxu0 0.0
    %86 = vmatpush1.msra.mxu0 %v48
    %87 = vmatprep.subr.mxu0 0.0
    %88 = vmatpush1.msra.mxu0 %v47
    %89 = vmatprep.subr.mxu0 0.0
    %90 = vmatpush1.msra.mxu0 %v46
    %91 = vmatprep.subr.mxu0 0.0
    %92 = vmatpush1.msra.mxu0 %v45
    %93 = vmatprep.subr.mxu0 0.0
    %94 = vmatpush2.msra.mxu0 0.0
    %95 = vmatprep.subr.mxu0 0.0
    %96 = vmatpush2.msra.mxu0 0.0
    %97 = vmatprep.subr.mxu0 0.0
    %98 = vmatpush2.msra.mxu0 0.0
    %99 = vmatprep.subr.mxu0 0.0
    %100 = vmatpush2.msra.mxu0 0.0
    %101 = vmatprep.subr.mxu0 0.0
    %102 = vmatpush2.msra.mxu0 0.0
    %103 = vmatprep.subr.mxu0 0.0
    %104 = vmatpush2.msra.mxu0 0.0
    %105 = vmatprep.subr.mxu0 0.0
    %106 = vmatpush2.msra.mxu0 0.0
    %107 = vmatprep.subr.mxu0 0.0
    %108 = vmatpush2.msra.mxu0 0.0
    %109 = vmatprep.subr.mxu0 0.0
    %110 = vmatpush2.msra.mxu0 0.0
    %111 = vmatprep.subr.mxu0 0.0
    %112 = vmatpush2.msra.mxu0 0.0
    %113 = vmatprep.subr.mxu0 0.0
    %114 = vmatpush2.msra.mxu0 0.0
    %115 = vmatprep.subr.mxu0 0.0
    %116 = vmatpush2.msra.mxu0 0.0
    %117 = vmatprep.subr.mxu0 0.0
    %118 = vmatpush2.msra.mxu0 0.0
    %119 = vmatprep.subr.mxu0 0.0
    %120 = vmatpush2.msra.mxu0 0.0
    %121 = vmatprep.subr.mxu0 0.0
    %122 = vmatpush2.msra.mxu0 0.0
    %123 = vmatprep.subr.mxu0 0.0
    %124 = vmatpush2.msra.mxu0 0.0
    %125 = vmatprep.mubr.f32.mxu0 0.0
    %126 = vmatmul.mubr.f32.gmra.mxu0 %v44
    %v127 = vpop.f32.mrf.mxu0
    %v128 = vadd.f32 1e-06, %v127
    %v129 = vpop.f32.mrf.mxu0
    %130 = vdwg.mxu0
    %v131 = vrsqrt.pop %v128
    %v132 = vmul.f32 %v43, %v131
    %v133 = vld [vmem:[%s1] sm:$0x1]
    %v135 = vlaneseq
    %v136 = vshrl.u32 %v135, 7
    %v137 = vsub.s32 0, %v136
    %v138 = vrot.slane %v133, %v137
    %v140 = vmul.f32 %v132, %v138
    %141 = vst [vmem:[#allocation7] sm:$0xff] %v140
    // Predicated region
    $region22: #{tpu_custom_call.1} parent=1 // pred_check
      _
    $region23: #{tpu_custom_call.1} parent=1 // pred_check_branch
      %143 = sbr.rel (0) target = $region25
    $region24: #{tpu_custom_call.1} parent=1 // pred_region
      %s145 = ssub.s32 128, 64
      %146 = vsyncadd [#allocation4], %s145
      %s147 = sshll.u32 [#allocation7], 4
      %s148 = int_to_ptr.vmem [resolvable:$true] %s147
      %153 = dma.vmem_to_hbm [thread:$0]  %s148, 64, %s3, [#allocation4], 64, 64, 4
    $region25: #{tpu_custom_call.1} parent=1 // pred_fallthru
      _
    // Predicated region
    $region26: #{tpu_custom_call.1} parent=1 // pred_check
      _
    $region27: #{tpu_custom_call.1} parent=1 // pred_check_branch
      %155 = sbr.rel (0) target = $region29
    $region28: #{tpu_custom_call.1} parent=1 // pred_region
      %156 = dma.done [#allocation4], 128
    $region29: #{tpu_custom_call.1} parent=1 // pred_fallthru
      _
    %157 = vsyncpa [#allocation3], 1
    %158 = vsyncpa [#allocation6], 1
    %159 = vsyncpa [#allocation4], 1

</llo_original>
